<compile_context>
chip_gen: v5e
topology: v5e:2x2
jax: 0.10.0
libtpu: 0.0.40
codegen_flags: <defaults>
</compile_context>

<pallas_src>
import jax
import jax.numpy as jnp
from jax.experimental import pallas as pl
from jax.experimental.pallas import tpu as pltpu


def _round_up(x, m):
    return ((x + m - 1) // m) * m


_VMEM = pl.BlockSpec(memory_space=pltpu.MemorySpace.VMEM)


# -----------------------------------------------------------------------------
# pltpu.roll direction probe (run once, cached).  The gate-alignment shifts are
# static compile-time constants whose value depends on the rotation direction
# convention; a tiny probe kernel pins it down so the main kernel is correct
# either way.
# -----------------------------------------------------------------------------
_ROLL_IS_JNP_ROLL = None


def _roll_matches_jnp_roll():
    global _ROLL_IS_JNP_ROLL
    if _ROLL_IS_JNP_ROLL is None:
        x = jnp.broadcast_to(jnp.arange(128, dtype=jnp.float32)[None, :], (8, 128))

        def probe(x_ref, o_ref):
            o_ref[...] = pltpu.roll(x_ref[...], shift=1, axis=1)

        y = pl.pallas_call(
            probe,
            out_shape=jax.ShapeDtypeStruct((8, 128), jnp.float32),
            in_specs=[_VMEM],
            out_specs=_VMEM,
        )(x)
        # jnp.roll semantics: y[:, 0] == x[:, -1] == 127
        _ROLL_IS_JNP_ROLL = bool(float(y[0, 0]) == 127.0)
    return _ROLL_IS_JNP_ROLL


def _gate_roll_shifts(hidden):
    """Shifts such that roll(gates, s_m, axis=-1)[:, k] == gates[:, k + m*H]."""
    H = hidden
    if _roll_matches_jnp_roll():
        return 3 * H, 2 * H, H        # shift = (4 - m) * H  (mod 4H)
    return H, 2 * H, 3 * H            # opposite rotation convention


# -----------------------------------------------------------------------------
# Kernel: multi-layer LSTM + final Linear, fully resident in VMEM, static
# unroll over (time, layer) in wavefront order.
# -----------------------------------------------------------------------------
def _make_lstm_kernel(*, num_layers, seq_len, batch, b_pad, f_pad, hidden,
                      h_pad, out_size, roll_shifts):
    L, T = num_layers, seq_len
    B, Bp = batch, b_pad
    Hp, H4, Fp = h_pad, 4 * hidden, f_pad
    shift_f, shift_g, shift_o = roll_shifts

    def kernel(x_ref, p_ref, out_ref):
        # ---- static, sublane-aligned views of the packed parameter slab ----
        off = 0
        w_ih, w_hh = [], []
        for l in range(L):
            rows = Fp if l == 0 else Hp
            w_ih.append(p_ref[pl.ds(off, rows), :]); off += rows
            w_hh.append(p_ref[pl.ds(off, Hp), :]);   off += Hp
        w_lin = p_ref[pl.ds(off, Hp), :]; off += Hp
        bias_off = off
        b0_row = p_ref[pl.ds(bias_off, 1), :]                         # (1, 4H)
        step_bias = [None] + [
            jnp.broadcast_to(p_ref[pl.ds(bias_off + l, 1), :], (Bp, H4))
            for l in range(1, L)
        ]
        b_lin_row = p_ref[pl.ds(bias_off + L, 1), :]                  # (1, 4H)

        # ---- hoisted layer-0 input projection: one (T*Bp, Fp)@(Fp, 4H) op ----
        xp0 = (jnp.dot(x_ref[...], w_ih[0], preferred_element_type=jnp.float32)
               + b0_row)                                              # (T*Bp, 4H)

        def cell(gates, c_prev):
            # Full-width activations (EUP) + XLU rolls to align f/g/o with the
            # cell-state lanes.  Lanes >= hidden of c carry bounded garbage that
            # never reaches the output: h is truncated to its first Hp lanes
            # (offset-0 slice, no relayout) and padded weight rows are zero.
            sig = jax.nn.sigmoid(gates)                               # i|f|.|o
            tnh = jnp.tanh(gates)                                     # .|.|g|.
            f_g = pltpu.roll(sig, shift=shift_f, axis=1)
            g_g = pltpu.roll(tnh, shift=shift_g, axis=1)
            o_g = pltpu.roll(sig, shift=shift_o, axis=1)
            c_new = f_g * c_prev + sig * g_g
            h_new = (o_g * jnp.tanh(c_new))[:, :Hp]                   # (Bp, Hp)
            return h_new, c_new

        h = [jnp.zeros((Bp, Hp), jnp.float32) for _ in range(L)]
        c = [jnp.zeros((Bp, H4), jnp.float32) for _ in range(L)]

        # Wavefront-interleaved static unroll: layer l step t right after
        # layer l-1 step t, so it can overlap with layer l-1 step t+1.
        for t in range(T):
            g0 = xp0[t * Bp:(t + 1) * Bp, :]          # sublane-tile aligned
            if t > 0:
                g0 = g0 + jnp.dot(h[0], w_hh[0],
                                  preferred_element_type=jnp.float32)
            h[0], c[0] = cell(g0, c[0])
            for l in range(1, L):
                g_l = (jnp.dot(h[l - 1], w_ih[l],
                               preferred_element_type=jnp.float32)
                       + step_bias[l])
                if t > 0:
                    g_l = g_l + jnp.dot(h[l], w_hh[l],
                                        preferred_element_type=jnp.float32)
                h[l], c[l] = cell(g_l, c[l])

        # ---- final Linear against a lane-dense zero-padded weight block ----
        out_full = (jnp.dot(h[L - 1], w_lin,
                            preferred_element_type=jnp.float32) + b_lin_row)
        out_ref[...] = out_full[:B, :out_size]

    return kernel


# -----------------------------------------------------------------------------
# Wrapper: packs all parameters into one (rows, 4H) slab, lays the input out
# time-major with the batch padded to the 8-row sublane tile, and calls the
# kernel once.
# -----------------------------------------------------------------------------
def passenger_wait_time_lstm_forward(input_seq, params, *, hidden_size,
                                     output_size, num_layers):
    """input_seq: (batch, seq_len, input_size) f32 -> (batch, output_size)."""
    B, T, F = input_seq.shape
    H = hidden_size
    H4 = 4 * H
    Fp = _round_up(F, 8)
    Hp = _round_up(H, 8)
    Bp = _round_up(B, 8)

    # Time-major slab: rows [t*Bp, t*Bp + B) of x2d hold timestep t (rest zero),
    # so the kernel's per-timestep slices are sublane-tile aligned.
    x_tm = jnp.transpose(input_seq, (1, 0, 2)).astype(jnp.float32)    # (T, B, F)
    x2d = jnp.zeros((T, Bp, Fp), jnp.float32).at[:, :B, :F].set(
        x_tm).reshape(T * Bp, Fp)

    def pad_rows(m, rows):
        m = jnp.asarray(m, jnp.float32)
        return jnp.zeros((rows, m.shape[1]), jnp.float32).at[:m.shape[0], :].set(m)

    blocks, bias_rows = [], []
    for l in range(num_layers):
        w_ih_l, w_hh_l, b_ih_l, b_hh_l = params["layers"][l]
        blocks.append(pad_rows(jnp.asarray(w_ih_l, jnp.float32).T,
                               Fp if l == 0 else Hp))                 # (., 4H)
        blocks.append(pad_rows(jnp.asarray(w_hh_l, jnp.float32).T, Hp))
        bias_rows.append(jnp.asarray(b_ih_l + b_hh_l, jnp.float32))
    w_lin_blk = jnp.zeros((Hp, H4), jnp.float32).at[:H, :output_size].set(
        jnp.asarray(params["w_lin"], jnp.float32).T)
    blocks.append(w_lin_blk)
    bias_rows.append(jnp.zeros((H4,), jnp.float32).at[:output_size].set(
        jnp.asarray(params["b_lin"], jnp.float32)))
    bias_blk = jnp.zeros((_round_up(num_layers + 1, 8), H4),
                         jnp.float32).at[:num_layers + 1, :].set(
                             jnp.stack(bias_rows))
    blocks.append(bias_blk)
    p_all = jnp.concatenate(blocks, axis=0)                           # (rows, 4H)

    kernel = _make_lstm_kernel(
        num_layers=num_layers, seq_len=T, batch=B, b_pad=Bp, f_pad=Fp,
        hidden=H, h_pad=Hp, out_size=output_size,
        roll_shifts=_gate_roll_shifts(H))

    out = pl.pallas_call(
        kernel,
        out_shape=jax.ShapeDtypeStruct((B, output_size), jnp.float32),
        in_specs=[_VMEM, _VMEM],
        out_specs=_VMEM,
    )(x2d, p_all)
    return out


# -----------------------------------------------------------------------------
# Pure-JAX reference (mirrors torch.nn.LSTM + nn.Linear) for validation.
# -----------------------------------------------------------------------------
def reference_forward(x, params, *, hidden_size, num_layers):
    B, T, _ = x.shape
    H = hidden_size
    layer_in = x
    for l in range(num_layers):
        w_ih, w_hh, b_ih, b_hh = params["layers"][l]
        h = jnp.zeros((B, H), jnp.float32)
        c = jnp.zeros((B, H), jnp.float32)
        outs = []
        for t in range(T):
            gates = layer_in[:, t, :] @ w_ih.T + b_ih + h @ w_hh.T + b_hh
            i_g = jax.nn.sigmoid(gates[:, :H])
            f_g = jax.nn.sigmoid(gates[:, H:2 * H])
            g_g = jnp.tanh(gates[:, 2 * H:3 * H])
            o_g = jax.nn.sigmoid(gates[:, 3 * H:])
            c = f_g * c + i_g * g_g
            h = o_g * jnp.tanh(c)
            outs.append(h)
        layer_in = jnp.stack(outs, axis=1)
    return layer_in[:, -1, :] @ params["w_lin"].T + params["b_lin"]


# -----------------------------------------------------------------------------
# Deterministic parameter init (same shapes / init range as torch defaults).
# -----------------------------------------------------------------------------
def init_params(key, input_size, hidden_size, output_size, num_layers):
    H = hidden_size
    bound = 1.0 / jnp.sqrt(jnp.float32(H))
    params = {"layers": []}
    for l in range(num_layers):
        in_dim = input_size if l == 0 else H
        key, k1, k2, k3, k4 = jax.random.split(key, 5)
        w_ih = jax.random.uniform(k1, (4 * H, in_dim), jnp.float32, -bound, bound)
        w_hh = jax.random.uniform(k2, (4 * H, H), jnp.float32, -bound, bound)
        b_ih = jax.random.uniform(k3, (4 * H,), jnp.float32, -bound, bound)
        b_hh = jax.random.uniform(k4, (4 * H,), jnp.float32, -bound, bound)
        params["layers"].append((w_ih, w_hh, b_ih, b_hh))
    key, k5, k6 = jax.random.split(key, 3)
    params["w_lin"] = jax.random.uniform(k5, (output_size, H), jnp.float32, -bound, bound)
    params["b_lin"] = jax.random.uniform(k6, (output_size,), jnp.float32, -bound, bound)
    return params


if __name__ == "__main__":
    INPUT_SIZE = 8
    HIDDEN = 32        # 4*H = 128 -> gates fill exactly one lane group
    OUTPUT_SIZE = 1
    NUM_LAYERS = 2
    BATCH = 2
    SEQ = 8

    key = jax.random.PRNGKey(0)
    key, xkey = jax.random.split(key)
    x = jax.random.normal(xkey, (BATCH, SEQ, INPUT_SIZE), jnp.float32)
    params = init_params(key, INPUT_SIZE, HIDDEN, OUTPUT_SIZE, NUM_LAYERS)

    out = jax.block_until_ready(passenger_wait_time_lstm_forward(
        x, params, hidden_size=HIDDEN, output_size=OUTPUT_SIZE,
        num_layers=NUM_LAYERS))

    ref = reference_forward(x, params, hidden_size=HIDDEN,
                            num_layers=NUM_LAYERS)
    assert out.shape == (BATCH, OUTPUT_SIZE), out.shape
    assert jnp.allclose(out, ref, atol=1e-4, rtol=1e-4), (out, ref)

    print("KERNEL_OK")
</pallas_src>

<mosaic_0001>
module attributes {stable_mosaic.version = 11 : i64} {
  func.func @probe(%arg0: memref<8x128xf32, #tpu.memory_space<vmem>>, %arg1: memref<8x128xf32, #tpu.memory_space<vmem>>) attributes {dimension_semantics = [], scalar_prefetch = 0 : i64, scratch_operands = 0 : i64, tpu.core_type = #tpu.core_type<tc>} {
    %c0 = arith.constant 0 : index
    %c0_0 = arith.constant 0 : index
    %0 = vector.load %arg0[%c0, %c0_0] : memref<8x128xf32, #tpu.memory_space<vmem>>, vector<8x128xf32>
    %c1_i32 = arith.constant 1 : i32
    %1 = tpu.dynamic_rotate %0 by %c1_i32 dim 1 : vector<8x128xf32>, i32 -> vector<8x128xf32>
    %c0_1 = arith.constant 0 : index
    %c0_2 = arith.constant 0 : index
    %2 = vector.load %arg1[%c0_1, %c0_2] : memref<8x128xf32, #tpu.memory_space<vmem>>, vector<8x128xf32>
    tpu.vector_store %arg1[%c0_1, %c0_2], %1 {strides = array<i32>} : memref<8x128xf32, #tpu.memory_space<vmem>>, vector<8x128xf32>,
    return
  }
}

</mosaic_0001>

<llo_original>
// kernel: tpu_custom_call.1
$region0: #{tpu_custom_call.1}
  #allocation0 [shape = 'u32[]', space=smem, size = 0x4, offset = 0x4, fixed_abs, tag = 'smem constant byte address 0x4 - core index']
  #allocation1 [shape = 'u32[72,128]{1,0:T(1,128)}', space=vmem, size = 0x9000, scoped, tag = 'internal scratch']
  %s0 = inlined_call_operand.hbm [shape: f32[8,128], index: 0, kind: input, shape index: {}]
  %s1 = inlined_call_operand.hbm [shape: f32[8,128], index: 1, kind: output, shape index: {}]
  %s2 = sld [smem:[#allocation0]]
  $region18: #{tpu_custom_call.1} parent=0
    _
  %s4 = ssub.s32 1, %s2
  %s5 = scalar_select 0, %s4, %s2
  $region1: #{tpu_custom_call.1} parent=0
    #allocation2 [shape = 'u8[4096]{0}', space=vmem, size = 0x1000, scoped, tag = 'input window, operand 0, single buffered']
    #allocation3 [shape = 's32[1]{0}', space=sflag, size = 0x4, scoped, tag = 'scoped memory for tpu_custom_call.1']
    #allocation4 [shape = 's32[1]{0}', space=sflag, size = 0x4, scoped, tag = 'scoped memory for tpu_custom_call.1']
    #allocation5 [shape = 'u8[4096]{0}', space=vmem, size = 0x1000, scoped, tag = 'output window, operand 0, single buffered']
    %6 = vsyncpa [#allocation3], 0
    %7 = vsyncpa [#allocation4], 0
    // Predicated region
    $region2: #{tpu_custom_call.1} parent=1 // pred_check
      _
    $region3: #{tpu_custom_call.1} parent=1 // pred_check_branch
      %9 = sbr.rel (0) target = $region5
    $region4: #{tpu_custom_call.1} parent=1 // pred_region
      %11 = vsyncadd [#allocation3], 0
      %s13 = sshll.u32 %s0, 4
      %s14 = int_to_ptr.hbm [resolvable:$true] %s13
      %s15 = sshll.u32 [#allocation2], 4
      %s16 = int_to_ptr.vmem [resolvable:$true] %s15
      %18 = dma.hbm_to_vmem [thread:$0]  %s14, 128, %s16, [#allocation3]
    $region5: #{tpu_custom_call.1} parent=1 // pred_fallthru
      _
    // Predicated region
    $region6: #{tpu_custom_call.1} parent=1 // pred_check
      _
    $region7: #{tpu_custom_call.1} parent=1 // pred_check_branch
      %20 = sbr.rel (0) target = $region9
    $region8: #{tpu_custom_call.1} parent=1 // pred_region
      %22 = dma.done [#allocation3], 128
    $region9: #{tpu_custom_call.1} parent=1 // pred_fallthru
      _
    %v23 = vld [vmem:[#allocation2] sm:$0xff]
    %24 = vrot.lane.b32.xlu0 %v23, 1
    %v25 = vpop.permute.xlu0 %24
    %26 = vst [vmem:[#allocation5] sm:$0xff] %v25
    // Predicated region
    $region10: #{tpu_custom_call.1} parent=1 // pred_check
      _
    $region11: #{tpu_custom_call.1} parent=1 // pred_check_branch
      %28 = sbr.rel (0) target = $region13
    $region12: #{tpu_custom_call.1} parent=1 // pred_region
      %30 = vsyncadd [#allocation4], 0
      %s32 = sshll.u32 [#allocation5], 4
      %s33 = int_to_ptr.vmem [resolvable:$true] %s32
      %s34 = sshll.u32 %s1, 4
      %s35 = int_to_ptr.hbm [resolvable:$true] %s34
      %37 = dma.vmem_to_hbm [thread:$0]  %s33, 128, %s35, [#allocation4]
    $region13: #{tpu_custom_call.1} parent=1 // pred_fallthru
      _
    // Predicated region
    $region14: #{tpu_custom_call.1} parent=1 // pred_check
      _
    $region15: #{tpu_custom_call.1} parent=1 // pred_check_branch
      %39 = sbr.rel (0) target = $region17
    $region16: #{tpu_custom_call.1} parent=1 // pred_region
      %41 = dma.done [#allocation4], 128
    $region17: #{tpu_custom_call.1} parent=1 // pred_fallthru
      _
    %42 = vsyncpa [#allocation3], 1
    %43 = vsyncpa [#allocation4], 1

</llo_original>
